<compile_context>
chip_gen: v5e
topology: v5e:2x2
jax: 0.10.0
libtpu: 0.0.40
codegen_flags: <defaults>
</compile_context>

<pallas_src>
import functools

import jax
import jax.numpy as jnp
from jax import lax
from jax.experimental import pallas as pl
from jax.experimental.pallas import tpu as pltpu


def _round_up(x, m):
    return ((x + m - 1) // m) * m


def _w2v_gemv_kernel(x_ref, w_ref, o_ref, *, tk, v_total, ragged):
    """One (batch-tile, V-tile) step of  out[1, TB] += w_vec[1, TK] . x[TB, TK]^T."""
    k = pl.program_id(1)

    @pl.when(k == 0)
    def _init():
        o_ref[...] = jnp.zeros_like(o_ref)

    x = x_ref[...]                                     # (TB, TK), native dtype
    if ragged:
        # The boundary V tile is a clipped DMA: columns past V hold undefined data.
        # Mask them to zero (VPU select, hidden under the DMA of the next tile);
        # this also neutralizes NaN/Inf garbage. `ragged` is trace-time static, so
        # this costs nothing when TK divides V.
        col = k * tk + lax.broadcasted_iota(jnp.int32, x.shape, 1)
        x = jnp.where(col < v_total, x, jnp.zeros_like(x))

    # (1, TK) x (TB, TK), contracting V on both operands -> lane-dense (1, TB) f32.
    # Accumulate directly in the resident output block (same block index for all k).
    o_ref[...] += lax.dot_general(
        w_ref[...], x,
        dimension_numbers=(((1,), (1,)), ((), ())),
        preferred_element_type=jnp.float32)


def _tile_vmem_bytes(tb, tk, x_itemsize):
    """Approximate VMEM footprint of the pipelined buffers (with layout padding)."""
    x_tiles = 2 * _round_up(tb, 8) * _round_up(tk, 128) * x_itemsize   # double buffered
    w_tiles = 2 * 8 * _round_up(tk, 128) * x_itemsize                  # (1, TK) tiles
    o_tiles = 2 * 8 * _round_up(tb, 128) * 4                           # (1, TB) f32 out
    return x_tiles + w_tiles + o_tiles


def _vmem_capacity_bytes():
    try:
        cap = getattr(pltpu.get_tpu_info(), "vmem_capacity_bytes", None)
        if cap:
            return int(cap)
    except Exception:
        pass
    return 64 << 20            # conservative fallback (v7x per-TC capacity)


def word2vec_neg_sampling_forward(x, w_emb, w_out, *,
                                  tile_k=4096, tile_b=512, x_buffers=2):
    """x: (B, V), w_emb: (E, V), w_out: (1, E)  ->  (B, 1) float32."""
    B, V = x.shape
    E = w_emb.shape[0]
    assert w_emb.shape == (E, V)
    assert w_out.shape == (1, E)

    # ---- fold the two Linears' weights once (reads W_emb exactly once): (1, V) ----
    w_vec = jnp.dot(w_out.astype(jnp.float32), w_emb.astype(jnp.float32),
                    preferred_element_type=jnp.float32)
    w_vec = w_vec.astype(x.dtype)       # match x's dtype for the in-kernel MXU dot

    # ---- batch tiling: full-extent block for small B; otherwise 128-aligned blocks,
    # capped so there are >= 2 blocks (lets the v7x megacore shard the parallel axis).
    if B <= 128:
        TB = B
    else:
        TB = max(128, min(_round_up(tile_b, 128), _round_up((B + 1) // 2, 128)))
    nb = pl.cdiv(B, TB)

    # ---- V tiling: full-extent for small V; otherwise big 256-aligned tiles,
    # auto-shrunk to the current generation's VMEM capacity.
    cap = int(0.80 * _vmem_capacity_bytes())   # ~51 MiB on v7x, ~102 MiB on v5e/v6e
    isz = jnp.dtype(x.dtype).itemsize
    if V <= tile_k:
        TK = V
    else:
        TK = max(256, (tile_k // 256) * 256)
        while 2 * _tile_vmem_bytes(TB, TK, isz) > cap and TK > 512:
            TK //= 2
    nk = pl.cdiv(V, TK)
    ragged = (V % TK) != 0

    # Pad only the tiny folded weight vector so its blocks are always in-bounds zeros.
    # x itself is never padded, copied, or cast — it streams from HBM exactly once.
    Vp = nk * TK
    if Vp != V:
        w_vec = jnp.pad(w_vec, ((0, 0), (0, Vp - V)))

    vmem_limit = int(min(cap, max(2 * _tile_vmem_bytes(TB, TK, isz), 32 << 20)))

    # Optional deeper input pipelining (useful on v7x if input DMA is exposed).
    x_spec_kwargs = {} if x_buffers == 2 else dict(pipeline_mode=pl.Buffered(x_buffers))

    kernel = functools.partial(_w2v_gemv_kernel, tk=TK, v_total=V, ragged=ragged)

    out = pl.pallas_call(
        kernel,
        out_shape=jax.ShapeDtypeStruct((1, B), jnp.float32),
        grid_spec=pltpu.PrefetchScalarGridSpec(
            num_scalar_prefetch=0,
            grid=(nb, nk),                               # batch parallel, V reduction last
            in_specs=[
                pl.BlockSpec((TB, TK), lambda i, k: (i, k), **x_spec_kwargs),  # x
                pl.BlockSpec((1, TK), lambda i, k: (0, k)),                    # w_vec
            ],
            out_specs=pl.BlockSpec((1, TB), lambda i, k: (0, i)),              # lane-dense
        ),
        compiler_params=pltpu.CompilerParams(
            dimension_semantics=("parallel", "arbitrary"),
            vmem_limit_bytes=vmem_limit,
        ),
    )(x, w_vec)

    return out.T                                         # (B, 1) float32


if __name__ == "__main__":
    embedding_size = 30
    vocab_size = 64
    batch = 8

    key = jax.random.PRNGKey(0)
    k_x, k_emb, k_out, k_x2, k_emb2 = jax.random.split(key, 5)

    # --- small shapes consistent with the module ---
    x = jax.random.normal(k_x, (batch, vocab_size), dtype=jnp.float32)
    bound_emb = 1.0 / (vocab_size ** 0.5)
    w_emb = jax.random.uniform(
        k_emb, (embedding_size, vocab_size), dtype=jnp.float32,
        minval=-bound_emb, maxval=bound_emb)
    bound_out = 1.0 / (embedding_size ** 0.5)
    w_out = jax.random.uniform(
        k_out, (1, embedding_size), dtype=jnp.float32,
        minval=-bound_out, maxval=bound_out)

    out = jax.block_until_ready(word2vec_neg_sampling_forward(x, w_emb, w_out))
    ref = (x @ w_emb.T) @ w_out.T
    assert out.shape == (batch, 1)
    assert jnp.allclose(out, ref, atol=1e-3, rtol=1e-3), "mismatch vs reference (f32)"

    # --- exercise multiple batch blocks (parallel axis), multiple V tiles and the
    # ragged / partial-block handling (no padding of x anywhere) ---
    B2, V2 = 200, 9000                     # TB=128 -> 2 batch blocks; TK=4096 -> 3 V tiles
    x2 = jax.random.normal(k_x2, (B2, V2), dtype=jnp.float32)
    b2 = 1.0 / (V2 ** 0.5)
    w_emb2 = jax.random.uniform(
        k_emb2, (embedding_size, V2), dtype=jnp.float32, minval=-b2, maxval=b2)
    ref2 = (x2 @ w_emb2.T) @ w_out.T

    out2 = jax.block_until_ready(word2vec_neg_sampling_forward(x2, w_emb2, w_out))
    assert out2.shape == (B2, 1)
    assert jnp.allclose(out2, ref2, atol=2e-3, rtol=2e-3), "mismatch vs reference (tiled f32)"

    # bf16 x path: the kernel streams x in its native dtype (no wrapper cast needed).
    out2_bf16 = jax.block_until_ready(
        word2vec_neg_sampling_forward(x2.astype(jnp.bfloat16), w_emb2, w_out))
    assert jnp.allclose(out2_bf16, ref2, atol=3e-2, rtol=3e-2), "mismatch vs reference (bf16)"

    print("KERNEL_OK")
</pallas_src>

<mosaic_0001>
module attributes {stable_mosaic.version = 11 : i64} {
  func.func @_w2v_gemv_kernel(%arg0: i32, %arg1: i32, %arg2: memref<8x64xf32, #tpu.memory_space<vmem>>, %arg3: memref<1x64xf32, #tpu.memory_space<vmem>>, %arg4: memref<1x8xf32, #tpu.memory_space<vmem>>) attributes {dimension_semantics = [#tpu.dimension_semantics<parallel>, #tpu.dimension_semantics<arbitrary>], iteration_bounds = array<i64: 1, 1>, scalar_prefetch = 0 : i64, scratch_operands = 0 : i64, tpu.core_type = #tpu.core_type<tc>, window_params = [{transform_indices = @transform_0, window_bounds = array<i64: 8, 64>}, {transform_indices = @transform_1, window_bounds = array<i64: 1, 64>}, {transform_indices = @transform_2, window_bounds = array<i64: 1, 8>}]} {
    %c0_i32 = arith.constant 0 : i32
    %0 = arith.cmpi eq, %arg1, %c0_i32 : i32
    %1 = arith.extui %0 : i1 to i32
    %c0_i32_0 = arith.constant 0 : i32
    %2 = arith.cmpi ne, %1, %c0_i32_0 : i32
    scf.if %2 {
      %cst_8 = arith.constant 0.000000e+00 : f32
      %9 = vector.broadcast %cst_8 : f32 to vector<1x8xf32>
      %c0_9 = arith.constant 0 : index
      %c0_10 = arith.constant 0 : index
      %10 = vector.load %arg4[%c0_9, %c0_10] : memref<1x8xf32, #tpu.memory_space<vmem>>, vector<1x8xf32>
      tpu.vector_store %arg4[%c0_9, %c0_10], %9 {strides = array<i32>} : memref<1x8xf32, #tpu.memory_space<vmem>>, vector<1x8xf32>,
    } else {
    }
    %c0 = arith.constant 0 : index
    %c0_1 = arith.constant 0 : index
    %3 = vector.load %arg2[%c0, %c0_1] : memref<8x64xf32, #tpu.memory_space<vmem>>, vector<8x64xf32>
    %c0_2 = arith.constant 0 : index
    %c0_3 = arith.constant 0 : index
    %4 = vector.load %arg4[%c0_2, %c0_3] : memref<1x8xf32, #tpu.memory_space<vmem>>, vector<1x8xf32>
    %c0_4 = arith.constant 0 : index
    %c0_5 = arith.constant 0 : index
    %5 = vector.load %arg3[%c0_4, %c0_5] : memref<1x64xf32, #tpu.memory_space<vmem>>, vector<1x64xf32>
    %cst = arith.constant dense<0.000000e+00> : vector<1x8xf32>
    %6 = tpu.matmul %5, %3, %cst {dimension_numbers = #tpu.dot_dimension_numbers<[1], [1], [0], [0], [0, 0, 1, 0], [], []>} : vector<1x64xf32>, vector<8x64xf32>, vector<1x8xf32> -> vector<1x8xf32>
    %7 = arith.addf %4, %6 : vector<1x8xf32>
    %c0_6 = arith.constant 0 : index
    %c0_7 = arith.constant 0 : index
    %8 = vector.load %arg4[%c0_6, %c0_7] : memref<1x8xf32, #tpu.memory_space<vmem>>, vector<1x8xf32>
    tpu.vector_store %arg4[%c0_6, %c0_7], %7 {strides = array<i32>} : memref<1x8xf32, #tpu.memory_space<vmem>>, vector<1x8xf32>,
    return
  }
  func.func @transform_0(%arg0: i32, %arg1: i32) -> (i32, i32) {
    %c0_i32 = arith.constant 0 : i32
    return %arg0, %arg1 : i32, i32
  }
  func.func @transform_1(%arg0: i32, %arg1: i32) -> (i32, i32) {
    %c0_i32 = arith.constant 0 : i32
    %c0_i32_0 = arith.constant 0 : i32
    return %c0_i32, %arg1 : i32, i32
  }
  func.func @transform_2(%arg0: i32, %arg1: i32) -> (i32, i32) {
    %c0_i32 = arith.constant 0 : i32
    %c0_i32_0 = arith.constant 0 : i32
    return %c0_i32, %arg0 : i32, i32
  }
}

</mosaic_0001>

<llo_original>
// kernel: tpu_custom_call.1
$region0: #{tpu_custom_call.1}
  #allocation0 [shape = 'u32[]', space=smem, size = 0x4, offset = 0x4, fixed_abs, tag = 'smem constant byte address 0x4 - core index']
  #allocation1 [shape = 'u32[72,128]{1,0:T(1,128)}', space=vmem, size = 0x9000, scoped, tag = 'internal scratch']
  %s0 = inlined_call_operand.hbm [shape: f32[8,64], index: 0, kind: input, shape index: {}]
  %s1 = inlined_call_operand.hbm [shape: f32[1,64], index: 1, kind: input, shape index: {}]
  %s2 = inlined_call_operand.hbm [shape: f32[1,8], index: 2, kind: output, shape index: {}]
  %s3 = sld [smem:[#allocation0]]
  $region30: #{tpu_custom_call.1} parent=0
    _
  %s5 = ssub.s32 1, %s3
  %s6 = scalar_select 0, %s5, %s3
  $region1: #{tpu_custom_call.1} parent=0
    #allocation2 [shape = 'u8[4096]{0}', space=vmem, size = 0x1000, scoped, tag = 'input window, operand 0, single buffered']
    #allocation3 [shape = 's32[1]{0}', space=sflag, size = 0x4, scoped, tag = 'scoped memory for tpu_custom_call.1']
    #allocation4 [shape = 's32[1]{0}', space=sflag, size = 0x4, scoped, tag = 'scoped memory for tpu_custom_call.1']
    #allocation5 [shape = 'u8[512]{0}', space=vmem, size = 0x400, scoped, tag = 'input window, operand 1, single buffered']
    #allocation6 [shape = 's32[1]{0}', space=sflag, size = 0x4, scoped, tag = 'scoped memory for tpu_custom_call.1']
    #allocation7 [shape = 'u8[512]{0}', space=vmem, size = 0x400, scoped, tag = 'output window, operand 0, single buffered']
    %7 = vsyncpa [#allocation3], 0
    %8 = vsyncpa [#allocation6], 0
    %9 = vsyncpa [#allocation4], 0
    // Predicated region
    $region2: #{tpu_custom_call.1} parent=1 // pred_check
      _
    $region3: #{tpu_custom_call.1} parent=1 // pred_check_branch
      %11 = sbr.rel (0) target = $region5
    $region4: #{tpu_custom_call.1} parent=1 // pred_region
      %13 = vsyncadd [#allocation3], 0
      %s15 = sshll.u32 %s0, 4
      %s16 = int_to_ptr.hbm [resolvable:$true] %s15
      %s17 = sshll.u32 [#allocation2], 4
      %s18 = int_to_ptr.vmem [resolvable:$true] %s17
      %20 = dma.hbm_to_vmem [thread:$0]  %s16, 128, %s18, [#allocation3]
    $region5: #{tpu_custom_call.1} parent=1 // pred_fallthru
      _
    // Predicated region
    $region6: #{tpu_custom_call.1} parent=1 // pred_check
      _
    $region7: #{tpu_custom_call.1} parent=1 // pred_check_branch
      %22 = sbr.rel (0) target = $region9
    $region8: #{tpu_custom_call.1} parent=1 // pred_region
      %24 = vsyncadd [#allocation6], 0
      %s26 = sshll.u32 %s1, 4
      %s27 = int_to_ptr.hbm [resolvable:$true] %s26
      %s28 = sshll.u32 [#allocation5], 4
      %s29 = int_to_ptr.vmem [resolvable:$true] %s28
      %31 = dma.hbm_to_vmem [thread:$0]  %s27, 16, %s29, [#allocation6]
    $region9: #{tpu_custom_call.1} parent=1 // pred_fallthru
      _
    // Predicated region
    $region10: #{tpu_custom_call.1} parent=1 // pred_check
      _
    $region11: #{tpu_custom_call.1} parent=1 // pred_check_branch
      %33 = sbr.rel (0) target = $region13
    $region12: #{tpu_custom_call.1} parent=1 // pred_region
      %35 = dma.done [#allocation3], 128
    $region13: #{tpu_custom_call.1} parent=1 // pred_fallthru
      _
    // Predicated region
    $region14: #{tpu_custom_call.1} parent=1 // pred_check
      _
    $region15: #{tpu_custom_call.1} parent=1 // pred_check_branch
      %37 = sbr.rel (0) target = $region17
    $region16: #{tpu_custom_call.1} parent=1 // pred_region
      %39 = dma.done [#allocation6], 16
    $region17: #{tpu_custom_call.1} parent=1 // pred_fallthru
      _
    %p40 = scmp.eq.s32.totalorder 0, 0
    // Predicated region
    $region18: #{tpu_custom_call.1} parent=1 // pred_check
      %p41 = pneg %p40
    $region19: #{tpu_custom_call.1} parent=1 // pred_check_branch
      %43 = sbr.rel (%p41) target = $region21
    $region20: #{tpu_custom_call.1} parent=1 // pred_region
      %vm44 = vcmask 57344
      %45 = vst.msk [vmem:[#allocation7] sm:$0x1] %vm44, 0.0
    $region21: #{tpu_custom_call.1} parent=1 // pred_fallthru
      _
    %v46 = vld [vmem:[#allocation2] sm:$0xff]
    %v47 = vld [vmem:[#allocation7] sm:$0x1]
    %v48 = vld [vmem:[#allocation5] sm:$0x1]
    %vm49 = vcmask 523264
    %v51 = vsel %vm49, %v48, 0
    %v54 = vsel %vm49, %v46, 0
    %56 = vmatpush.xpose.msra.mxu0 0.0
    %57 = vmatpush.xpose.msra.mxu0 0.0
    %58 = vmatpush.xpose.msra.mxu0 0.0
    %59 = vmatpush.xpose.msra.mxu0 0.0
    %60 = vmatpush.xpose.msra.mxu0 0.0
    %61 = vmatpush.xpose.msra.mxu0 0.0
    %62 = vmatpush.xpose.msra.mxu0 0.0
    %63 = vmatpush.xpose.msra.mxu0 0.0
    %64 = vmatpush.xpose.msra.mxu0 0.0
    %65 = vmatpush.xpose.msra.mxu0 0.0
    %66 = vmatpush.xpose.msra.mxu0 0.0
    %67 = vmatpush.xpose.msra.mxu0 0.0
    %68 = vmatpush.xpose.msra.mxu0 0.0
    %69 = vmatpush.xpose.msra.mxu0 0.0
    %70 = vmatpush.xpose.msra.mxu0 0.0
    %71 = vmatpush.xpose.msra.mxu0 %v54
    %72 = vmatmul.f32.gmra.mxu0 %v51
    %v73 = vpop.f32.mrf.mxu0
    %v74 = vadd.f32 0.0, %v73
    %75 = vdwg.mxu0
    %v76 = vadd.f32 %v47, %v74
    %vm77 = vcmask 57344
    %78 = vst.msk [vmem:[#allocation7] sm:$0x1] %vm77, %v76
    // Predicated region
    $region22: #{tpu_custom_call.1} parent=1 // pred_check
      _
    $region23: #{tpu_custom_call.1} parent=1 // pred_check_branch
      %80 = sbr.rel (0) target = $region25
    $region24: #{tpu_custom_call.1} parent=1 // pred_region
      %82 = vsyncadd [#allocation4], 0
      %s84 = sshll.u32 [#allocation7], 4
      %s85 = int_to_ptr.vmem [resolvable:$true] %s84
      %s86 = sshll.u32 %s2, 4
      %s87 = int_to_ptr.hbm [resolvable:$true] %s86
      %89 = dma.vmem_to_hbm [thread:$0]  %s85, 16, %s87, [#allocation4]
    $region25: #{tpu_custom_call.1} parent=1 // pred_fallthru
      _
    // Predicated region
    $region26: #{tpu_custom_call.1} parent=1 // pred_check
      _
    $region27: #{tpu_custom_call.1} parent=1 // pred_check_branch
      %91 = sbr.rel (0) target = $region29
    $region28: #{tpu_custom_call.1} parent=1 // pred_region
      %93 = dma.done [#allocation4], 16
    $region29: #{tpu_custom_call.1} parent=1 // pred_fallthru
      _
    %94 = vsyncpa [#allocation3], 1
    %95 = vsyncpa [#allocation6], 1
    %96 = vsyncpa [#allocation4], 1

</llo_original>
